<compile_context>
chip_gen: v7x
topology: tpu7x:2x2x1
jax: 0.10.0
libtpu: 0.0.40
codegen_flags: <defaults>
</compile_context>

<pallas_src>
import functools

import jax
import jax.numpy as jnp
from jax.experimental import pallas as pl
from jax.experimental.pallas import tpu as pltpu


def _round_up(n, m):
    return ((n + m - 1) // m) * m


def _sigmoid_via_tanh(x):
    # sigmoid(x) == 0.5 * tanh(0.5 * x) + 0.5 : one EUP op + one VPU FMA.
    return 0.5 * jnp.tanh(0.5 * x) + 0.5


def _lstm_cell_kernel(x_ref, h_ref, c_ref, w_ref, u_ref, b_ref,
                      o_out, h_out, c_out):
    # Two MXU passes (K = input_size and K = hidden_size), bf16 inputs,
    # f32 accumulation.  Activations are cast to bf16 in-kernel (VPU cast),
    # avoiding any wrapper-side HBM materialization.
    gates = (jnp.dot(x_ref[...].astype(w_ref.dtype), w_ref[...],
                     preferred_element_type=jnp.float32)
             + jnp.dot(h_ref[...].astype(u_ref.dtype), u_ref[...],
                       preferred_element_type=jnp.float32)
             + b_ref[...])

    H = c_ref.shape[-1]
    # Gate order (f, i, o, g); H is a multiple of 128 so every slice is a full
    # 128-lane multiple (free vreg selection, unmasked stores).
    f = _sigmoid_via_tanh(gates[:, 0 * H:1 * H])   # act1
    i = _sigmoid_via_tanh(gates[:, 1 * H:2 * H])   # act1
    o = _sigmoid_via_tanh(gates[:, 2 * H:3 * H])   # act1
    g = jnp.tanh(gates[:, 3 * H:4 * H])            # act2

    c_new = f * c_ref[...] + i * g                 # f32 recurrent state
    h_new = o * jnp.tanh(c_new)                    # act3

    o_out[...] = o.astype(o_out.dtype)
    h_out[...] = h_new.astype(h_out.dtype)
    c_out[...] = c_new


def fuse_lstm_params(Wif, Uhf, bf, Wii, Uhi, bi, Wio, Uho, bo, Wig, Uhg, bg,
                     weight_dtype=jnp.bfloat16):
    """Stack per-gate params into W:(in,4H), U:(H,4H) bf16 and b:(1,4H) f32.

    Gate order along the 4H axis is (f, i, o, g), matching the module.  The
    module has exactly one bias per gate; nothing needs to be pre-summed.
    """
    W = jnp.concatenate([Wif, Wii, Wio, Wig], axis=1).astype(weight_dtype)
    U = jnp.concatenate([Uhf, Uhi, Uho, Uhg], axis=1).astype(weight_dtype)
    b = jnp.concatenate([bf, bi, bo, bg]).reshape(1, -1).astype(jnp.float32)
    return W, U, b


def lstm_cell_forward(x, s, fused_params, *, block_b=256,
                      ho_dtype=jnp.bfloat16):
    """Pallas LSTM cell. Returns (o, (h_new, c_new)) like the torch module.

    o and h_new are emitted in `ho_dtype` (bf16 by default, the dtype h is
    rounded to for the next step's matmul anyway); c_new is always float32.
    """
    h, c = s
    B = x.shape[0]
    IN = x.shape[-1]
    H = h.shape[-1]
    W, U, b2d = fused_params

    if H % 128 != 0:
        raise ValueError(
            f"hidden_size must be a multiple of 128 for lane-aligned gate "
            f"slices and unmasked stores; got {H}. Pad the hidden dim.")

    x = x.astype(jnp.float32)
    h = h.astype(jnp.float32)
    c = c.astype(jnp.float32)

    # Batch tile: sublane-aligned, capped at block_b.
    bm = min(block_b, _round_up(B, 8))
    # v7x: make sure the grid has >= 2 steps so both TensorCores get work.
    if B >= 16 and pl.cdiv(B, bm) < 2:
        bm = _round_up(pl.cdiv(B, 2), 8)
    nb = pl.cdiv(B, bm)  # ragged last block: OOB reads are row-local garbage,
                         # OOB writes are dropped (math is row-independent).

    ho_bytes = jnp.dtype(ho_dtype).itemsize
    bytes_accessed = (x.size * 4 + h.size * 4 + c.size * 4
                      + W.size * W.dtype.itemsize
                      + U.size * U.dtype.itemsize
                      + b2d.size * 4
                      + B * H * (2 * ho_bytes + 4))
    cost = pl.CostEstimate(flops=2 * B * (IN + H) * 4 * H,
                           transcendentals=5 * B * H,   # 4 gate tanh + 1 cell tanh
                           bytes_accessed=bytes_accessed)

    o, h_new, c_new = pl.pallas_call(
        _lstm_cell_kernel,
        out_shape=(
            jax.ShapeDtypeStruct((B, H), ho_dtype),     # o
            jax.ShapeDtypeStruct((B, H), ho_dtype),     # h_new
            jax.ShapeDtypeStruct((B, H), jnp.float32),  # c_new
        ),
        grid=(nb,),
        in_specs=[
            pl.BlockSpec((bm, IN), lambda i: (i, 0)),       # x batch tile (f32)
            pl.BlockSpec((bm, H), lambda i: (i, 0)),        # h batch tile (f32)
            pl.BlockSpec((bm, H), lambda i: (i, 0)),        # c batch tile (f32)
            pl.BlockSpec((IN, 4 * H), lambda i: (0, 0)),    # W (VMEM-resident)
            pl.BlockSpec((H, 4 * H), lambda i: (0, 0)),     # U (VMEM-resident)
            pl.BlockSpec((1, 4 * H), lambda i: (0, 0)),     # bias (VMEM-resident)
        ],
        out_specs=(
            pl.BlockSpec((bm, H), lambda i: (i, 0)),
            pl.BlockSpec((bm, H), lambda i: (i, 0)),
            pl.BlockSpec((bm, H), lambda i: (i, 0)),
        ),
        compiler_params=pltpu.CompilerParams(
            dimension_semantics=("parallel",)),             # shard batch tiles across TCs
        cost_estimate=cost,
    )(x, h, c, W, U, b2d)

    return o, (h_new, c_new)


# ---------------------------------------------------------------------------
# References for the self-test.
# ---------------------------------------------------------------------------

def _reference_module(x, s, raw_params):
    """Pure-f32 reference with the exact per-gate math of the torch module."""
    h, c = s
    (Wif, Uhf, bf, Wii, Uhi, bi, Wio, Uho, bo, Wig, Uhg, bg) = raw_params
    f = jax.nn.sigmoid(x @ Wif + h @ Uhf + bf)
    i = jax.nn.sigmoid(x @ Wii + h @ Uhi + bi)
    o = jax.nn.sigmoid(x @ Wio + h @ Uho + bo)
    g = jnp.tanh(x @ Wig + h @ Uhg + bg)
    c_new = f * c + i * g
    h_new = o * jnp.tanh(c_new)
    return o, (h_new, c_new)


def _reference_matched(x, s, fused_params):
    """Reference using the same bf16-rounded matmul inputs as the kernel."""
    h, c = s
    W, U, b2d = fused_params
    H = h.shape[-1]
    gates = (x.astype(W.dtype).astype(jnp.float32) @ W.astype(jnp.float32)
             + h.astype(U.dtype).astype(jnp.float32) @ U.astype(jnp.float32)
             + b2d)
    f = jax.nn.sigmoid(gates[:, 0 * H:1 * H])
    i = jax.nn.sigmoid(gates[:, 1 * H:2 * H])
    o = jax.nn.sigmoid(gates[:, 2 * H:3 * H])
    g = jnp.tanh(gates[:, 3 * H:4 * H])
    c_new = f * c + i * g
    h_new = o * jnp.tanh(c_new)
    return o, (h_new, c_new)


if __name__ == "__main__":
    B, INPUT, HIDDEN = 8, 64, 128

    key = jax.random.PRNGKey(0)
    keys = jax.random.split(key, 15)

    x = jax.random.normal(keys[0], (B, INPUT), dtype=jnp.float32)
    h0 = jax.random.normal(keys[1], (B, HIDDEN), dtype=jnp.float32)
    c0 = jax.random.normal(keys[2], (B, HIDDEN), dtype=jnp.float32)

    def _w(k, shape):
        return jax.random.normal(k, shape, dtype=jnp.float32) * 0.1

    Wif, Wii, Wio, Wig = (_w(keys[j], (INPUT, HIDDEN)) for j in range(3, 7))
    Uhf, Uhi, Uho, Uhg = (_w(keys[j], (HIDDEN, HIDDEN)) for j in range(7, 11))
    bf, bi, bo, bg = (_w(keys[j], (HIDDEN,)) for j in range(11, 15))

    raw_params = (Wif, Uhf, bf, Wii, Uhi, bi, Wio, Uho, bo, Wig, Uhg, bg)
    fused_params = fuse_lstm_params(*raw_params)

    # --- f32-output path: tight check against a bit-matched reference. ------
    fwd_f32 = jax.jit(functools.partial(lstm_cell_forward,
                                        ho_dtype=jnp.float32))
    o32, (h32, c32) = fwd_f32(x, (h0, c0), fused_params)
    jax.block_until_ready((o32, h32, c32))

    o_m, (h_m, c_m) = _reference_matched(x, (h0, c0), fused_params)
    assert jnp.allclose(o32, o_m, atol=1e-4), "o mismatch (matched ref, f32)"
    assert jnp.allclose(h32, h_m, atol=1e-4), "h mismatch (matched ref, f32)"
    assert jnp.allclose(c32, c_m, atol=1e-4), "c mismatch (matched ref, f32)"

    # --- default bf16 o/h path: loose checks. --------------------------------
    fwd = jax.jit(lstm_cell_forward)
    o, (h1, c1) = fwd(x, (h0, c0), fused_params)
    jax.block_until_ready((o, h1, c1))

    o_f = o.astype(jnp.float32)
    h_f = h1.astype(jnp.float32)
    assert jnp.allclose(o_f, o_m, atol=2e-2), "o mismatch (matched ref, bf16)"
    assert jnp.allclose(h_f, h_m, atol=2e-2), "h mismatch (matched ref, bf16)"
    assert jnp.allclose(c1, c_m, atol=1e-4), "c mismatch (matched ref, bf16)"

    # Loose check against the pure-f32 module semantics (bf16 weight rounding).
    o_r, (h_r, c_r) = _reference_module(x, (h0, c0), raw_params)
    assert jnp.allclose(o_f, o_r, atol=5e-2), "o mismatch (module ref)"
    assert jnp.allclose(h_f, h_r, atol=5e-2), "h mismatch (module ref)"
    assert jnp.allclose(c1, c_r, atol=5e-2), "c mismatch (module ref)"

    print("KERNEL_OK")
</pallas_src>

<mosaic_0001>
module attributes {stable_mosaic.version = 11 : i64} {
  func.func @_lstm_cell_kernel(%arg0: i32, %arg1: memref<8x64xf32, #tpu.memory_space<vmem>>, %arg2: memref<8x128xf32, #tpu.memory_space<vmem>>, %arg3: memref<8x128xf32, #tpu.memory_space<vmem>>, %arg4: memref<64x512xbf16, #tpu.memory_space<vmem>>, %arg5: memref<128x512xbf16, #tpu.memory_space<vmem>>, %arg6: memref<1x512xf32, #tpu.memory_space<vmem>>, %arg7: memref<8x128xf32, #tpu.memory_space<vmem>>, %arg8: memref<8x128xf32, #tpu.memory_space<vmem>>, %arg9: memref<8x128xf32, #tpu.memory_space<vmem>>) attributes {dimension_semantics = [#tpu.dimension_semantics<parallel>], iteration_bounds = array<i64: 1>, scalar_prefetch = 0 : i64, scratch_operands = 0 : i64, tpu.core_type = #tpu.core_type<tc>, window_params = [{transform_indices = @transform_0, window_bounds = array<i64: 8, 64>}, {transform_indices = @transform_1, window_bounds = array<i64: 8, 128>}, {transform_indices = @transform_2, window_bounds = array<i64: 8, 128>}, {pipeline_mode = #tpu.pipeline_mode<synchronous>, transform_indices = @transform_3, window_bounds = array<i64: 64, 512>}, {pipeline_mode = #tpu.pipeline_mode<synchronous>, transform_indices = @transform_4, window_bounds = array<i64: 128, 512>}, {pipeline_mode = #tpu.pipeline_mode<synchronous>, transform_indices = @transform_5, window_bounds = array<i64: 1, 512>}, {transform_indices = @transform_6, window_bounds = array<i64: 8, 128>}, {transform_indices = @transform_7, window_bounds = array<i64: 8, 128>}, {transform_indices = @transform_8, window_bounds = array<i64: 8, 128>}]} {
    %c0 = arith.constant 0 : index
    %c0_0 = arith.constant 0 : index
    %0 = vector.load %arg1[%c0, %c0_0] : memref<8x64xf32, #tpu.memory_space<vmem>>, vector<8x64xf32>
    %1 = arith.truncf %0 : vector<8x64xf32> to vector<8x64xbf16>
    %c0_1 = arith.constant 0 : index
    %c0_2 = arith.constant 0 : index
    %2 = vector.load %arg4[%c0_1, %c0_2] : memref<64x512xbf16, #tpu.memory_space<vmem>>, vector<64x512xbf16>
    %cst = arith.constant dense<0.000000e+00> : vector<8x512xf32>
    %3 = tpu.matmul %1, %2, %cst {dimension_numbers = #tpu.dot_dimension_numbers<[1], [0], [0], [1], [0, 0, 1, 1], [], []>} : vector<8x64xbf16>, vector<64x512xbf16>, vector<8x512xf32> -> vector<8x512xf32>
    %c0_3 = arith.constant 0 : index
    %c0_4 = arith.constant 0 : index
    %4 = vector.load %arg2[%c0_3, %c0_4] : memref<8x128xf32, #tpu.memory_space<vmem>>, vector<8x128xf32>
    %5 = arith.truncf %4 : vector<8x128xf32> to vector<8x128xbf16>
    %c0_5 = arith.constant 0 : index
    %c0_6 = arith.constant 0 : index
    %6 = vector.load %arg5[%c0_5, %c0_6] : memref<128x512xbf16, #tpu.memory_space<vmem>>, vector<128x512xbf16>
    %cst_7 = arith.constant dense<0.000000e+00> : vector<8x512xf32>
    %7 = tpu.matmul %5, %6, %cst_7 {dimension_numbers = #tpu.dot_dimension_numbers<[1], [0], [0], [1], [0, 0, 1, 1], [], []>} : vector<8x128xbf16>, vector<128x512xbf16>, vector<8x512xf32> -> vector<8x512xf32>
    %8 = arith.addf %3, %7 : vector<8x512xf32>
    %c0_8 = arith.constant 0 : index
    %c0_9 = arith.constant 0 : index
    %9 = vector.load %arg6[%c0_8, %c0_9] : memref<1x512xf32, #tpu.memory_space<vmem>>, vector<1x512xf32>
    %10 = vector.broadcast %9 : vector<1x512xf32> to vector<8x512xf32>
    %11 = arith.addf %8, %10 : vector<8x512xf32>
    %12 = vector.extract_strided_slice %11 {offsets = [0, 0], sizes = [8, 128], strides = [1, 1]} : vector<8x512xf32> to vector<8x128xf32>
    %cst_10 = arith.constant 5.000000e-01 : f32
    %13 = vector.broadcast %cst_10 : f32 to vector<8x128xf32>
    %14 = arith.mulf %13, %12 : vector<8x128xf32>
    %15 = math.tanh %14 : vector<8x128xf32>
    %cst_11 = arith.constant 5.000000e-01 : f32
    %16 = vector.broadcast %cst_11 : f32 to vector<8x128xf32>
    %17 = arith.mulf %16, %15 : vector<8x128xf32>
    %cst_12 = arith.constant 5.000000e-01 : f32
    %18 = vector.broadcast %cst_12 : f32 to vector<8x128xf32>
    %19 = arith.addf %17, %18 : vector<8x128xf32>
    %20 = vector.extract_strided_slice %11 {offsets = [0, 128], sizes = [8, 128], strides = [1, 1]} : vector<8x512xf32> to vector<8x128xf32>
    %cst_13 = arith.constant 5.000000e-01 : f32
    %21 = vector.broadcast %cst_13 : f32 to vector<8x128xf32>
    %22 = arith.mulf %21, %20 : vector<8x128xf32>
    %23 = math.tanh %22 : vector<8x128xf32>
    %cst_14 = arith.constant 5.000000e-01 : f32
    %24 = vector.broadcast %cst_14 : f32 to vector<8x128xf32>
    %25 = arith.mulf %24, %23 : vector<8x128xf32>
    %cst_15 = arith.constant 5.000000e-01 : f32
    %26 = vector.broadcast %cst_15 : f32 to vector<8x128xf32>
    %27 = arith.addf %25, %26 : vector<8x128xf32>
    %28 = vector.extract_strided_slice %11 {offsets = [0, 256], sizes = [8, 128], strides = [1, 1]} : vector<8x512xf32> to vector<8x128xf32>
    %cst_16 = arith.constant 5.000000e-01 : f32
    %29 = vector.broadcast %cst_16 : f32 to vector<8x128xf32>
    %30 = arith.mulf %29, %28 : vector<8x128xf32>
    %31 = math.tanh %30 : vector<8x128xf32>
    %cst_17 = arith.constant 5.000000e-01 : f32
    %32 = vector.broadcast %cst_17 : f32 to vector<8x128xf32>
    %33 = arith.mulf %32, %31 : vector<8x128xf32>
    %cst_18 = arith.constant 5.000000e-01 : f32
    %34 = vector.broadcast %cst_18 : f32 to vector<8x128xf32>
    %35 = arith.addf %33, %34 : vector<8x128xf32>
    %36 = vector.extract_strided_slice %11 {offsets = [0, 384], sizes = [8, 128], strides = [1, 1]} : vector<8x512xf32> to vector<8x128xf32>
    %37 = math.tanh %36 : vector<8x128xf32>
    %c0_19 = arith.constant 0 : index
    %c0_20 = arith.constant 0 : index
    %38 = vector.load %arg3[%c0_19, %c0_20] : memref<8x128xf32, #tpu.memory_space<vmem>>, vector<8x128xf32>
    %39 = arith.mulf %19, %38 : vector<8x128xf32>
    %40 = arith.mulf %27, %37 : vector<8x128xf32>
    %41 = arith.addf %39, %40 : vector<8x128xf32>
    %42 = math.tanh %41 : vector<8x128xf32>
    %43 = arith.mulf %35, %42 : vector<8x128xf32>
    %c0_21 = arith.constant 0 : index
    %c0_22 = arith.constant 0 : index
    %44 = vector.load %arg7[%c0_21, %c0_22] : memref<8x128xf32, #tpu.memory_space<vmem>>, vector<8x128xf32>
    tpu.vector_store %arg7[%c0_21, %c0_22], %35 {strides = array<i32>} : memref<8x128xf32, #tpu.memory_space<vmem>>, vector<8x128xf32>,
    %c0_23 = arith.constant 0 : index
    %c0_24 = arith.constant 0 : index
    %45 = vector.load %arg8[%c0_23, %c0_24] : memref<8x128xf32, #tpu.memory_space<vmem>>, vector<8x128xf32>
    tpu.vector_store %arg8[%c0_23, %c0_24], %43 {strides = array<i32>} : memref<8x128xf32, #tpu.memory_space<vmem>>, vector<8x128xf32>,
    %c0_25 = arith.constant 0 : index
    %c0_26 = arith.constant 0 : index
    %46 = vector.load %arg9[%c0_25, %c0_26] : memref<8x128xf32, #tpu.memory_space<vmem>>, vector<8x128xf32>
    tpu.vector_store %arg9[%c0_25, %c0_26], %41 {strides = array<i32>} : memref<8x128xf32, #tpu.memory_space<vmem>>, vector<8x128xf32>,
    return
  }
  func.func @transform_0(%arg0: i32) -> (i32, i32) {
    %c0_i32 = arith.constant 0 : i32
    %c0_i32_0 = arith.constant 0 : i32
    return %arg0, %c0_i32 : i32, i32
  }
  func.func @transform_1(%arg0: i32) -> (i32, i32) {
    %c0_i32 = arith.constant 0 : i32
    %c0_i32_0 = arith.constant 0 : i32
    return %arg0, %c0_i32 : i32, i32
  }
  func.func @transform_2(%arg0: i32) -> (i32, i32) {
    %c0_i32 = arith.constant 0 : i32
    %c0_i32_0 = arith.constant 0 : i32
    return %arg0, %c0_i32 : i32, i32
  }
  func.func @transform_3(%arg0: i32) -> (i32, i32) {
    %c0_i32 = arith.constant 0 : i32
    %c0_i32_0 = arith.constant 0 : i32
    %c0_i32_1 = arith.constant 0 : i32
    return %c0_i32, %c0_i32_0 : i32, i32
  }
  func.func @transform_4(%arg0: i32) -> (i32, i32) {
    %c0_i32 = arith.constant 0 : i32
    %c0_i32_0 = arith.constant 0 : i32
    %c0_i32_1 = arith.constant 0 : i32
    return %c0_i32, %c0_i32_0 : i32, i32
  }
  func.func @transform_5(%arg0: i32) -> (i32, i32) {
    %c0_i32 = arith.constant 0 : i32
    %c0_i32_0 = arith.constant 0 : i32
    %c0_i32_1 = arith.constant 0 : i32
    return %c0_i32, %c0_i32_0 : i32, i32
  }
  func.func @transform_6(%arg0: i32) -> (i32, i32) {
    %c0_i32 = arith.constant 0 : i32
    %c0_i32_0 = arith.constant 0 : i32
    return %arg0, %c0_i32 : i32, i32
  }
  func.func @transform_7(%arg0: i32) -> (i32, i32) {
    %c0_i32 = arith.constant 0 : i32
    %c0_i32_0 = arith.constant 0 : i32
    return %arg0, %c0_i32 : i32, i32
  }
  func.func @transform_8(%arg0: i32) -> (i32, i32) {
    %c0_i32 = arith.constant 0 : i32
    %c0_i32_0 = arith.constant 0 : i32
    return %arg0, %c0_i32 : i32, i32
  }
}

</mosaic_0001>

<llo_original>
// kernel: lstm_cell_forward.1
$region0: #{lstm_cell_forward.1}
  #allocation0 [shape = 'u32[]', space=smem, size = 0x4, offset = 0x4, fixed_abs, tag = 'smem constant byte address 0x4 - core index']
  #allocation1 [shape = 'u32[144,128]{1,0:T(1,128)}', space=vmem, size = 0x12000, scoped, tag = 'internal scratch']
  %s0 = inlined_call_operand.hbm [shape: f32[8,64], index: 0, kind: input, shape index: {}]
  %s1 = inlined_call_operand.hbm [shape: f32[8,128], index: 1, kind: input, shape index: {}]
  %s2 = inlined_call_operand.hbm [shape: f32[8,128], index: 2, kind: input, shape index: {}]
  %s3 = inlined_call_operand.hbm [shape: bf16[64,512], index: 3, kind: input, shape index: {}]
  %s4 = inlined_call_operand.hbm [shape: bf16[128,512], index: 4, kind: input, shape index: {}]
  %s5 = inlined_call_operand.vmem [shape: f32[1,512], index: 5, kind: input, shape index: {}]
  %s6 = inlined_call_operand.hbm [shape: f32[8,128], index: 6, kind: output, shape index: {0}]
  %s7 = inlined_call_operand.hbm [shape: f32[8,128], index: 7, kind: output, shape index: {1}]
  %s8 = inlined_call_operand.hbm [shape: f32[8,128], index: 8, kind: output, shape index: {2}]
  %9 = xla_tuple %s6, %s7, %s8
  %s10 = sld [smem:[#allocation0]]
  $region70: #{lstm_cell_forward.1} parent=0
    _
  %s12 = ssub.s32 1, %s10
  %s13 = scalar_select 0, %s12, %s10
  $region1: #{lstm_cell_forward.1} parent=0
    #allocation2 [shape = 'u8[4096]{0}', space=vmem, size = 0x1000, scoped, tag = 'input window, operand 0, single buffered']
    #allocation3 [shape = 's32[1]{0}', space=sflag, size = 0x4, scoped, tag = 'scoped memory for lstm_cell_forward.1']
    #allocation4 [shape = 's32[1]{0}', space=sflag, size = 0x4, scoped, tag = 'scoped memory for lstm_cell_forward.1']
    #allocation5 [shape = 'u8[4096]{0}', space=vmem, size = 0x1000, scoped, tag = 'input window, operand 1, single buffered']
    #allocation6 [shape = 's32[1]{0}', space=sflag, size = 0x4, scoped, tag = 'scoped memory for lstm_cell_forward.1']
    #allocation7 [shape = 'u8[4096]{0}', space=vmem, size = 0x1000, scoped, tag = 'input window, operand 2, single buffered']
    #allocation8 [shape = 'u8[65536]{0}', space=vmem, size = 0x10000, scoped, tag = 'input window, operand 3, single buffered']
    #allocation9 [shape = 's32[1]{0}', space=sflag, size = 0x4, scoped, tag = 'scoped memory for lstm_cell_forward.1']
    #allocation10 [shape = 'u8[131072]{0}', space=vmem, size = 0x20000, scoped, tag = 'input window, operand 4, single buffered']
    #allocation11 [shape = 'u8[4096]{0}', space=vmem, size = 0x1000, scoped, tag = 'output window, operand 0, single buffered']
    #allocation12 [shape = 'u8[4096]{0}', space=vmem, size = 0x1000, scoped, tag = 'output window, operand 1, single buffered']
    #allocation13 [shape = 's32[1]{0}', space=sflag, size = 0x4, scoped, tag = 'scoped memory for lstm_cell_forward.1']
    #allocation14 [shape = 'u8[4096]{0}', space=vmem, size = 0x1000, scoped, tag = 'output window, operand 2, single buffered']
    %14 = vsyncpa [#allocation3], 0
    %15 = vsyncpa [#allocation6], 0
    %16 = vsyncpa [#allocation9], 0
    %17 = vsyncpa [#allocation4], 0
    %18 = vsyncpa [#allocation13], 0
    // Predicated region
    $region2: #{lstm_cell_forward.1} parent=1 // pred_check
      _
    $region3: #{lstm_cell_forward.1} parent=1 // pred_check_branch
      %20 = sbr.rel (0) target = $region5
    $region4: #{lstm_cell_forward.1} parent=1 // pred_region
      %s22 = ssub.s32 128, 128
      %23 = vsyncadd [#allocation3], %s22
      %s25 = sshll.u32 [#allocation2], 4
      %s26 = int_to_ptr.vmem [resolvable:$true] %s25
      %28 = dma.hbm_to_vmem [thread:$0]  %s0, 128, %s26, [#allocation3]
    $region5: #{lstm_cell_forward.1} parent=1 // pred_fallthru
      _
    // Predicated region
    $region6: #{lstm_cell_forward.1} parent=1 // pred_check
      _
    $region7: #{lstm_cell_forward.1} parent=1 // pred_check_branch
      %30 = sbr.rel (0) target = $region9
    $region8: #{lstm_cell_forward.1} parent=1 // pred_region
      %s32 = ssub.s32 128, 128
      %33 = vsyncadd [#allocation6], %s32
      %s35 = sshll.u32 [#allocation5], 4
      %s36 = int_to_ptr.vmem [resolvable:$true] %s35
      %38 = dma.hbm_to_vmem [thread:$0]  %s1, 128, %s36, [#allocation6]
    $region9: #{lstm_cell_forward.1} parent=1 // pred_fallthru
      _
    // Predicated region
    $region10: #{lstm_cell_forward.1} parent=1 // pred_check
      _
    $region11: #{lstm_cell_forward.1} parent=1 // pred_check_branch
      %40 = sbr.rel (0) target = $region13
    $region12: #{lstm_cell_forward.1} parent=1 // pred_region
      %s42 = ssub.s32 128, 128
      %43 = vsyncadd [#allocation6], %s42
      %s45 = sshll.u32 [#allocation7], 4
      %s46 = int_to_ptr.vmem [resolvable:$true] %s45
      %48 = dma.hbm_to_vmem [thread:$0]  %s2, 128, %s46, [#allocation6]
    $region13: #{lstm_cell_forward.1} parent=1 // pred_fallthru
      _
    // Predicated region
    $region14: #{lstm_cell_forward.1} parent=1 // pred_check
      _
    $region15: #{lstm_cell_forward.1} parent=1 // pred_check_branch
      %50 = sbr.rel (0) target = $region17
    $region16: #{lstm_cell_forward.1} parent=1 // pred_region
      %s52 = ssub.s32 2048, 2048
      %53 = vsyncadd [#allocation9], %s52
      %s54 = sshll.u32 [#allocation8], 4
      %s55 = int_to_ptr.vmem [resolvable:$true] %s54
      %60 = dma.hbm_to_vmem [thread:$0]  %s3, 2048, %s55, [#allocation9], 256, 256, 16
    $region17: #{lstm_cell_forward.1} parent=1 // pred_fallthru
      _
    // Predicated region
    $region18: #{lstm_cell_forward.1} parent=1 // pred_check
      _
    $region19: #{lstm_cell_forward.1} parent=1 // pred_check_branch
      %62 = sbr.rel (0) target = $region21
    $region20: #{lstm_cell_forward.1} parent=1 // pred_region
      %s64 = ssub.s32 4096, 4096
      %65 = vsyncadd [#allocation9], %s64
      %s66 = sshll.u32 [#allocation10], 4
      %s67 = int_to_ptr.vmem [resolvable:$true] %s66
      %72 = dma.hbm_to_vmem [thread:$0]  %s4, 4096, %s67, [#allocation9], 256, 256, 16
    $region21: #{lstm_cell_forward.1} parent=1 // pred_fallthru
      _
    // Predicated region
    $region22: #{lstm_cell_forward.1} parent=1 // pred_check
      _
    $region23: #{lstm_cell_forward.1} parent=1 // pred_check_branch
      %74 = sbr.rel (0) target = $region25
    $region24: #{lstm_cell_forward.1} parent=1 // pred_region
      _
    $region25: #{lstm_cell_forward.1} parent=1 // pred_fallthru
      _
    // Predicated region
    $region26: #{lstm_cell_forward.1} parent=1 // pred_check
      _
    $region27: #{lstm_cell_forward.1} parent=1 // pred_check_branch
      %76 = sbr.rel (0) target = $region29
    $region28: #{lstm_cell_forward.1} parent=1 // pred_region
      %77 = dma.done [#allocation3], 128
    $region29: #{lstm_cell_forward.1} parent=1 // pred_fallthru
      _
    // Predicated region
    $region30: #{lstm_cell_forward.1} parent=1 // pred_check
      _
    $region31: #{lstm_cell_forward.1} parent=1 // pred_check_branch
      %79 = sbr.rel (0) target = $region33
    $region32: #{lstm_cell_forward.1} parent=1 // pred_region
      %80 = dma.done [#allocation6], 128
    $region33: #{lstm_cell_forward.1} parent=1 // pred_fallthru
      _
    // Predicated region
    $region34: #{lstm_cell_forward.1} parent=1 // pred_check
      _
    $region35: #{lstm_cell_forward.1} parent=1 // pred_check_branch
      %82 = sbr.rel (0) target = $region37
    $region36: #{lstm_cell_forward.1} parent=1 // pred_region
      %83 = dma.done [#allocation6], 128
    $region37: #{lstm_cell_forward.1} parent=1 // pred_fallthru
      _
    // Predicated region
    $region38: #{lstm_cell_forward.1} parent=1 // pred_check
      _
    $region39: #{lstm_cell_forward.1} parent=1 // pred_check_branch
      %85 = sbr.rel (0) target = $region41
    $region40: #{lstm_cell_forward.1} parent=1 // pred_region
      %86 = dma.done [#allocation9], 2048
    $region41: #{lstm_cell_forward.1} parent=1 // pred_fallthru
      _
    // Predicated region
    $region42: #{lstm_cell_forward.1} parent=1 // pred_check
      _
    $region43: #{lstm_cell_forward.1} parent=1 // pred_check_branch
      %88 = sbr.rel (0) target = $region45
    $region44: #{lstm_cell_forward.1} parent=1 // pred_region
      %89 = dma.done [#allocation9], 4096
    $region45: #{lstm_cell_forward.1} parent=1 // pred_fallthru
      _
    %v91 = vld [vmem:[#allocation2] sm:$0xff]
    %v92 = vpack.c.bf16 %v91, %v91
    %v93 = vld [vmem:[#allocation8] sm:$0xff]
    %v94 = vld [vmem:[#allocation8 + $0x8] sm:$0xff]
    %v95 = vld [vmem:[#allocation8 + $0x10] sm:$0xff]
    %v96 = vld [vmem:[#allocation8 + $0x18] sm:$0xff]
    %v97 = vld [vmem:[#allocation8 + $0x20] sm:$0xff]
    %v98 = vld [vmem:[#allocation8 + $0x28] sm:$0xff]
    %v99 = vld [vmem:[#allocation8 + $0x30] sm:$0xff]
    %v100 = vld [vmem:[#allocation8 + $0x38] sm:$0xff]
    %v101 = vld [vmem:[#allocation8 + $0x40] sm:$0xff]
    %v102 = vld [vmem:[#allocation8 + $0x48] sm:$0xff]
    %v103 = vld [vmem:[#allocation8 + $0x50] sm:$0xff]
    %v104 = vld [vmem:[#allocation8 + $0x58] sm:$0xff]
    %v105 = vld [vmem:[#allocation8 + $0x60] sm:$0xff]
    %v106 = vld [vmem:[#allocation8 + $0x68] sm:$0xff]
    %v107 = vld [vmem:[#allocation8 + $0x70] sm:$0xff]
    %v108 = vld [vmem:[#allocation8 + $0x78] sm:$0xff]
    %v109 = vld [vmem:[#allocation5] sm:$0xff]
    %v110 = vpack.c.bf16 %v109, %v109
    %v111 = vld [vmem:[#allocation10] sm:$0xff]
    %v112 = vld [vmem:[#allocation10 + $0x8] sm:$0xff]
    %v113 = vld [vmem:[#allocation10 + $0x10] sm:$0xff]
    %v114 = vld [vmem:[#allocation10 + $0x18] sm:$0xff]
    %v115 = vld [vmem:[#allocation10 + $0x20] sm:$0xff]
    %v116 = vld [vmem:[#allocation10 + $0x28] sm:$0xff]
    %v117 = vld [vmem:[#allocation10 + $0x30] sm:$0xff]
    %v118 = vld [vmem:[#allocation10 + $0x38] sm:$0xff]
    %v119 = vld [vmem:[#allocation10 + $0x40] sm:$0xff]
    %v120 = vld [vmem:[#allocation10 + $0x48] sm:$0xff]
    %v121 = vld [vmem:[#allocation10 + $0x50] sm:$0xff]
    %v122 = vld [vmem:[#allocation10 + $0x58] sm:$0xff]
    %v123 = vld [vmem:[#allocation10 + $0x60] sm:$0xff]
    %v124 = vld [vmem:[#allocation10 + $0x68] sm:$0xff]
    %v125 = vld [vmem:[#allocation10 + $0x70] sm:$0xff]
    %v126 = vld [vmem:[#allocation10 + $0x78] sm:$0xff]
    %v127 = vld [vmem:[#allocation10 + $0x80] sm:$0xff]
    %v128 = vld [vmem:[#allocation10 + $0x88] sm:$0xff]
    %v129 = vld [vmem:[#allocation10 + $0x90] sm:$0xff]
    %v130 = vld [vmem:[#allocation10 + $0x98] sm:$0xff]
    %v131 = vld [vmem:[#allocation10 + $0xa0] sm:$0xff]
    %v132 = vld [vmem:[#allocation10 + $0xa8] sm:$0xff]
    %v133 = vld [vmem:[#allocation10 + $0xb0] sm:$0xff]
    %v134 = vld [vmem:[#allocation10 + $0xb8] sm:$0xff]
    %v135 = vld [vmem:[#allocation10 + $0xc0] sm:$0xff]
    %v136 = vld [vmem:[#allocation10 + $0xc8] sm:$0xff]
    %v137 = vld [vmem:[#allocation10 + $0xd0] sm:$0xff]
    %v138 = vld [vmem:[#allocation10 + $0xd8] sm:$0xff]
    %v139 = vld [vmem:[#allocation10 + $0xe0] sm:$0xff]
    %v140 = vld [vmem:[#allocation10 + $0xe8] sm:$0xff]
    %v141 = vld [vmem:[#allocation10 + $0xf0] sm:$0xff]
    %v142 = vld [vmem:[#allocation10 + $0xf8] sm:$0xff]
    %v175 = vunpack.c.l.b16 %v111
    %v176 = vunpack.c.h.b16 %v111
    %v177 = vunpack.c.l.b16 %v112
    %v178 = vunpack.c.h.b16 %v112
    %v179 = vunpack.c.l.b16 %v113
    %v180 = vunpack.c.h.b16 %v113
    %v181 = vunpack.c.l.b16 %v114
    %v182 = vunpack.c.h.b16 %v114
    %v183 = vunpack.c.l.b16 %v115
    %v184 = vunpack.c.h.b16 %v115
    %v185 = vunpack.c.l.b16 %v116
    %v186 = vunpack.c.h.b16 %v116
    %v187 = vunpack.c.l.b16 %v117
    %v188 = vunpack.c.h.b16 %v117
    %v189 = vunpack.c.l.b16 %v118
    %v190 = vunpack.c.h.b16 %v118
    %v191 = vunpack.c.l.b16 %v119
    %v192 = vunpack.c.h.b16 %v119
    %v193 = vunpack.c.l.b16 %v120
    %v194 = vunpack.c.h.b16 %v120
    %v195 = vunpack.c.l.b16 %v121
    %v196 = vunpack.c.h.b16 %v121
    %v197 = vunpack.c.l.b16 %v122
    %v198 = vunpack.c.h.b16 %v122
    %v199 = vunpack.c.l.b16 %v123
    %v200 = vunpack.c.h.b16 %v123
    %v201 = vunpack.c.l.b16 %v124
    %v202 = vunpack.c.h.b16 %v124
    %v203 = vunpack.c.l.b16 %v125
    %v204 = vunpack.c.h.b16 %v125
    %v205 = vunpack.c.l.b16 %v126
    %v206 = vunpack.c.h.b16 %v126
    %v207 = vunpack.c.l.b16 %v127
    %v208 = vunpack.c.h.b16 %v127
    %v209 = vunpack.c.l.b16 %v128
    %v210 = vunpack.c.h.b16 %v128
    %v211 = vunpack.c.l.b16 %v129
    %v212 = vunpack.c.h.b16 %v129
    %v213 = vunpack.c.l.b16 %v130
    %v214 = vunpack.c.h.b16 %v130
    %v215 = vunpack.c.l.b16 %v131
    %v216 = vunpack.c.h.b16 %v131
    %v217 = vunpack.c.l.b16 %v132
    %v218 = vunpack.c.h.b16 %v132
    %v219 = vunpack.c.l.b16 %v133
    %v220 = vunpack.c.h.b16 %v133
    %v221 = vunpack.c.l.b16 %v134
    %v222 = vunpack.c.h.b16 %v134
    %v223 = vunpack.c.l.b16 %v135
    %v224 = vunpack.c.h.b16 %v135
    %v225 = vunpack.c.l.b16 %v136
    %v226 = vunpack.c.h.b16 %v136
    %v227 = vunpack.c.l.b16 %v137
    %v228 = vunpack.c.h.b16 %v137
    %v229 = vunpack.c.l.b16 %v138
    %v230 = vunpack.c.h.b16 %v138
    %v231 = vunpack.c.l.b16 %v139
    %v232 = vunpack.c.h.b16 %v139
    %v233 = vunpack.c.l.b16 %v140
    %v234 = vunpack.c.h.b16 %v140
    %v235 = vunpack.c.l.b16 %v141
    %v236 = vunpack.c.h.b16 %v141
    %v237 = vunpack.c.l.b16 %v142
    %v238 = vunpack.c.h.b16 %v142
    %v239 = vpack.c.b16 %v179, %v175
    %v240 = vpack.c.b16 %v180, %v176
    %v241 = vpack.c.b16 %v181, %v177
    %v242 = vpack.c.b16 %v182, %v178
    %v243 = vpack.c.b16 %v187, %v183
    %v244 = vpack.c.b16 %v188, %v184
    %v245 = vpack.c.b16 %v189, %v185
    %v246 = vpack.c.b16 %v190, %v186
    %v247 = vpack.c.b16 %v195, %v191
    %v248 = vpack.c.b16 %v196, %v192
    %v249 = vpack.c.b16 %v197, %v193
    %v250 = vpack.c.b16 %v198, %v194
    %v251 = vpack.c.b16 %v203, %v199
    %v252 = vpack.c.b16 %v204, %v200
    %v253 = vpack.c.b16 %v205, %v201
    %v254 = vpack.c.b16 %v206, %v202
    %v255 = vpack.c.b16 %v211, %v207
    %v256 = vpack.c.b16 %v212, %v208
    %v257 = vpack.c.b16 %v213, %v209
    %v258 = vpack.c.b16 %v214, %v210
    %v259 = vpack.c.b16 %v219, %v215
    %v260 = vpack.c.b16 %v220, %v216
    %v261 = vpack.c.b16 %v221, %v217
    %v262 = vpack.c.b16 %v222, %v218
    %v263 = vpack.c.b16 %v227, %v223
    %v264 = vpack.c.b16 %v228, %v224
    %v265 = vpack.c.b16 %v229, %v225
    %v266 = vpack.c.b16 %v230, %v226
    %v267 = vpack.c.b16 %v235, %v231
    %v268 = vpack.c.b16 %v236, %v232
    %v269 = vpack.c.b16 %v237, %v233
    %v270 = vpack.c.b16 %v238, %v234
    %303 = vmatprep.subr.bf16.mxu0 %v240
    %304 = vmatpush1.bf16.msra.mxu0 %v239
    %305 = vmatprep.subr.bf16.mxu0 %v244
    %306 = vmatpush1.bf16.msra.mxu0 %v243
    %307 = vmatprep.subr.bf16.mxu0 %v248
    %308 = vmatpush1.bf16.msra.mxu0 %v247
    %309 = vmatprep.subr.bf16.mxu0 %v252
    %310 = vmatpush1.bf16.msra.mxu0 %v251
    %311 = vmatprep.subr.bf16.mxu0 %v256
    %312 = vmatpush1.bf16.msra.mxu0 %v255
    %313 = vmatprep.subr.bf16.mxu0 %v260
    %314 = vmatpush1.bf16.msra.mxu0 %v259
    %315 = vmatprep.subr.bf16.mxu0 %v264
    %316 = vmatpush1.bf16.msra.mxu0 %v263
    %317 = vmatprep.subr.bf16.mxu0 %v268
    %318 = vmatpush1.bf16.msra.mxu0 %v267
    %319 = vmatprep.subr.bf16.mxu0 0
    %320 = vmatpush1.bf16.msra.mxu0 0
    %321 = vmatprep.subr.bf16.mxu0 0
    %322 = vmatpush1.bf16.msra.mxu0 0
    %323 = vmatprep.subr.bf16.mxu0 0
    %324 = vmatpush1.bf16.msra.mxu0 0
    %325 = vmatprep.subr.bf16.mxu0 0
    %326 = vmatpush1.bf16.msra.mxu0 0
    %327 = vmatprep.subr.bf16.mxu0 0
    %328 = vmatpush1.bf16.msra.mxu0 0
    %329 = vmatprep.subr.bf16.mxu0 0
    %330 = vmatpush1.bf16.msra.mxu0 0
    %331 = vmatprep.subr.bf16.mxu0 0
    %332 = vmatpush1.bf16.msra.mxu0 0
    %333 = vmatprep.subr.bf16.mxu0 0
    %334 = vmatpush1.bf16.msra.mxu0 0
    %335 = vmatprep.mubr.bf16.mxu0 0
    %336 = vmatmul.mubr.bf16.gmra.mrb[0].mxu0 %v110
    %v337 = vpop.f32.mrb[0].mxu0
    %v338 = vadd.f32 0.0, %v337
    %v339 = vpop.f32.mrb[0].mxu0
    %v340 = vadd.f32 0.0, %v339
    %v341 = vpop.f32.mrb[0].mxu0
    %v342 = vpop.f32.mrb[0].mxu0
    %343 = vdwg.mxu0
    %344 = vmatprep.subr.bf16.mxu0 %v242
    %345 = vmatpush1.bf16.msra.mxu0 %v241
    %346 = vmatprep.subr.bf16.mxu0 %v246
    %347 = vmatpush1.bf16.msra.mxu0 %v245
    %348 = vmatprep.subr.bf16.mxu0 %v250
    %349 = vmatpush1.bf16.msra.mxu0 %v249
    %350 = vmatprep.subr.bf16.mxu0 %v254
    %351 = vmatpush1.bf16.msra.mxu0 %v253
    %352 = vmatprep.subr.bf16.mxu0 %v258
    %353 = vmatpush1.bf16.msra.mxu0 %v257
    %354 = vmatprep.subr.bf16.mxu0 %v262
    %355 = vmatpush1.bf16.msra.mxu0 %v261
    %356 = vmatprep.subr.bf16.mxu0 %v266
    %357 = vmatpush1.bf16.msra.mxu0 %v265
    %358 = vmatprep.subr.bf16.mxu0 %v270
    %359 = vmatpush1.bf16.msra.mxu0 %v269
    %360 = vmatprep.subr.bf16.mxu0 0
    %361 = vmatpush1.bf16.msra.mxu0 0
    %362 = vmatprep.subr.bf16.mxu0 0
    %363 = vmatpush1.bf16.msra.mxu0 0
    %364 = vmatprep.subr.bf16.mxu0 0
    %365 = vmatpush1.bf16.msra.mxu0 0
    %366 = vmatprep.subr.bf16.mxu0 0
    %367 = vmatpush1.bf16.msra.mxu0 0
    %368 = vmatprep.subr.bf16.mxu0 0
    %369 = vmatpush1.bf16.msra.mxu0 0
    %370 = vmatprep.subr.bf16.mxu0 0
    %371 = vmatpush1.bf16.msra.mxu0 0
    %372 = vmatprep.subr.bf16.mxu0 0
    %373 = vmatpush1.bf16.msra.mxu0 0
    %374 = vmatprep.subr.bf16.mxu0 0
    %375 = vmatpush1.bf16.msra.mxu0 0
    %376 = vmatprep.mubr.bf16.mxu0 0
    %377 = vmatmul.mubr.bf16.gmra.mrb[0].mxu0 %v110
    %v378 = vpop.f32.mrb[0].mxu0
    %v379 = vadd.f32 0.0, %v378
    %v380 = vpop.f32.mrb[0].mxu0
    %v381 = vadd.f32 0.0, %v380
    %v382 = vpop.f32.mrb[0].mxu0
    %v383 = vpop.f32.mrb[0].mxu0
    %384 = vdwg.mxu0
    %v401 = vunpack.c.l.b16 %v93
    %v402 = vunpack.c.h.b16 %v93
    %v403 = vunpack.c.l.b16 %v94
    %v404 = vunpack.c.h.b16 %v94
    %v405 = vunpack.c.l.b16 %v95
    %v406 = vunpack.c.h.b16 %v95
    %v407 = vunpack.c.l.b16 %v96
    %v408 = vunpack.c.h.b16 %v96
    %v409 = vunpack.c.l.b16 %v97
    %v410 = vunpack.c.h.b16 %v97
    %v411 = vunpack.c.l.b16 %v98
    %v412 = vunpack.c.h.b16 %v98
    %v413 = vunpack.c.l.b16 %v99
    %v414 = vunpack.c.h.b16 %v99
    %v415 = vunpack.c.l.b16 %v100
    %v416 = vunpack.c.h.b16 %v100
    %v417 = vunpack.c.l.b16 %v101
    %v418 = vunpack.c.h.b16 %v101
    %v419 = vunpack.c.l.b16 %v102
    %v420 = vunpack.c.h.b16 %v102
    %v421 = vunpack.c.l.b16 %v103
    %v422 = vunpack.c.h.b16 %v103
    %v423 = vunpack.c.l.b16 %v104
    %v424 = vunpack.c.h.b16 %v104
    %v425 = vunpack.c.l.b16 %v105
    %v426 = vunpack.c.h.b16 %v105
    %v427 = vunpack.c.l.b16 %v106
    %v428 = vunpack.c.h.b16 %v106
    %v429 = vunpack.c.l.b16 %v107
    %v430 = vunpack.c.h.b16 %v107
    %v431 = vunpack.c.l.b16 %v108
    %v432 = vunpack.c.h.b16 %v108
    %v433 = vpack.c.b16 %v405, %v401
    %v434 = vpack.c.b16 %v406, %v402
    %v435 = vpack.c.b16 %v407, %v403
    %v436 = vpack.c.b16 %v408, %v404
    %v437 = vpack.c.b16 %v413, %v409
    %v438 = vpack.c.b16 %v414, %v410
    %v439 = vpack.c.b16 %v415, %v411
    %v440 = vpack.c.b16 %v416, %v412
    %v441 = vpack.c.b16 %v421, %v417
    %v442 = vpack.c.b16 %v422, %v418
    %v443 = vpack.c.b16 %v423, %v419
    %v444 = vpack.c.b16 %v424, %v420
    %v445 = vpack.c.b16 %v429, %v425
    %v446 = vpack.c.b16 %v430, %v426
    %v447 = vpack.c.b16 %v431, %v427
    %v448 = vpack.c.b16 %v432, %v428
    %vm465 = vcmask 523264
    %v467 = vsel %vm465, %v92, 0
    %469 = vmatprep.subr.bf16.mxu0 %v434
    %470 = vmatpush1.bf16.msra.mxu0 %v433
    %471 = vmatprep.subr.bf16.mxu0 %v438
    %472 = vmatpush1.bf16.msra.mxu0 %v437
    %473 = vmatprep.subr.bf16.mxu0 %v442
    %474 = vmatpush1.bf16.msra.mxu0 %v441
    %475 = vmatprep.subr.bf16.mxu0 %v446
    %476 = vmatpush1.bf16.msra.mxu0 %v445
    %477 = vmatprep.subr.bf16.mxu0 0
    %478 = vmatpush1.bf16.msra.mxu0 0
    %479 = vmatprep.subr.bf16.mxu0 0
    %480 = vmatpush1.bf16.msra.mxu0 0
    %481 = vmatprep.subr.bf16.mxu0 0
    %482 = vmatpush1.bf16.msra.mxu0 0
    %483 = vmatprep.subr.bf16.mxu0 0
    %484 = vmatpush1.bf16.msra.mxu0 0
    %485 = vmatprep.subr.bf16.mxu0 0
    %486 = vmatpush1.bf16.msra.mxu0 0
    %487 = vmatprep.subr.bf16.mxu0 0
    %488 = vmatpush1.bf16.msra.mxu0 0
    %489 = vmatprep.subr.bf16.mxu0 0
    %490 = vmatpush1.bf16.msra.mxu0 0
    %491 = vmatprep.subr.bf16.mxu0 0
    %492 = vmatpush1.bf16.msra.mxu0 0
    %493 = vmatprep.subr.bf16.mxu0 0
    %494 = vmatpush1.bf16.msra.mxu0 0
    %495 = vmatprep.subr.bf16.mxu0 0
    %496 = vmatpush1.bf16.msra.mxu0 0
    %497 = vmatprep.subr.bf16.mxu0 0
    %498 = vmatpush1.bf16.msra.mxu0 0
    %499 = vmatprep.subr.bf16.mxu0 0
    %500 = vmatpush1.bf16.msra.mxu0 0
    %501 = vmatprep.mubr.bf16.mxu0 0
    %502 = vmatmul.mubr.bf16.gmra.mrb[0].mxu0 %v467
    %v503 = vpop.f32.mrb[0].mxu0
    %v504 = vadd.f32 %v338, %v503
    %v505 = vpop.f32.mrb[0].mxu0
    %v506 = vadd.f32 %v340, %v505
    %v507 = vpop.f32.mrb[0].mxu0
    %v508 = vpop.f32.mrb[0].mxu0
    %509 = vdwg.mxu0
    %510 = vmatprep.subr.bf16.mxu0 %v436
    %511 = vmatpush1.bf16.msra.mxu0 %v435
    %512 = vmatprep.subr.bf16.mxu0 %v440
    %513 = vmatpush1.bf16.msra.mxu0 %v439
    %514 = vmatprep.subr.bf16.mxu0 %v444
    %515 = vmatpush1.bf16.msra.mxu0 %v443
    %516 = vmatprep.subr.bf16.mxu0 %v448
    %517 = vmatpush1.bf16.msra.mxu0 %v447
    %518 = vmatprep.subr.bf16.mxu0 0
    %519 = vmatpush1.bf16.msra.mxu0 0
    %520 = vmatprep.subr.bf16.mxu0 0
    %521 = vmatpush1.bf16.msra.mxu0 0
    %522 = vmatprep.subr.bf16.mxu0 0
    %523 = vmatpush1.bf16.msra.mxu0 0
    %524 = vmatprep.subr.bf16.mxu0 0
    %525 = vmatpush1.bf16.msra.mxu0 0
    %526 = vmatprep.subr.bf16.mxu0 0
    %527 = vmatpush1.bf16.msra.mxu0 0
    %528 = vmatprep.subr.bf16.mxu0 0
    %529 = vmatpush1.bf16.msra.mxu0 0
    %530 = vmatprep.subr.bf16.mxu0 0
    %531 = vmatpush1.bf16.msra.mxu0 0
    %532 = vmatprep.subr.bf16.mxu0 0
    %533 = vmatpush1.bf16.msra.mxu0 0
    %534 = vmatprep.subr.bf16.mxu0 0
    %535 = vmatpush1.bf16.msra.mxu0 0
    %536 = vmatprep.subr.bf16.mxu0 0
    %537 = vmatpush1.bf16.msra.mxu0 0
    %538 = vmatprep.subr.bf16.mxu0 0
    %539 = vmatpush1.bf16.msra.mxu0 0
    %540 = vmatprep.subr.bf16.mxu0 0
    %541 = vmatpush1.bf16.msra.mxu0 0
    %542 = vmatprep.mubr.bf16.mxu0 0
    %543 = vmatmul.mubr.bf16.gmra.mrb[0].mxu0 %v467
    %v544 = vpop.f32.mrb[0].mxu0
    %v545 = vadd.f32 %v379, %v544
    %v546 = vpop.f32.mrb[0].mxu0
    %v547 = vadd.f32 %v381, %v546
    %v548 = vpop.f32.mrb[0].mxu0
    %v549 = vpop.f32.mrb[0].mxu0
    %550 = vdwg.mxu0
    %v551 = vld [vmem:[%s5] sm:$0xf]
    %v553 = vlaneseq
    %v554 = vshrl.u32 %v553, 7
    %v555 = vsub.s32 0, %v554
    %v556 = vrot.slane %v551, %v555
    %v557 = vlaneseq
    %v558 = vshrl.u32 %v557, 7
    %v559 = vsub.s32 1, %v558
    %v560 = vrot.slane %v551, %v559
    %v561 = vlaneseq
    %v562 = vshrl.u32 %v561, 7
    %v563 = vsub.s32 2, %v562
    %v564 = vrot.slane %v551, %v563
    %v565 = vlaneseq
    %v566 = vshrl.u32 %v565, 7
    %v567 = vsub.s32 3, %v566
    %v568 = vrot.slane %v551, %v567
    %v573 = vadd.f32 %v504, %v556
    %v574 = vadd.f32 %v506, %v560
    %v575 = vadd.f32 %v545, %v564
    %v576 = vadd.f32 %v547, %v568
    %v577 = vmul.f32 %v573, 0.5
    %v578 = vtanh.pop %v577
    %v579 = vmul.f32 %v578, 0.5
    %v580 = vadd.f32 %v579, 0.5
    %v581 = vmul.f32 %v574, 0.5
    %v582 = vtanh.pop %v581
    %v583 = vmul.f32 %v582, 0.5
    %v584 = vadd.f32 %v583, 0.5
    %v585 = vmul.f32 %v575, 0.5
    %v586 = vtanh.pop %v585
    %v587 = vmul.f32 %v586, 0.5
    %v588 = vadd.f32 %v587, 0.5
    %v589 = vtanh.pop %v576
    %v590 = vld [vmem:[#allocation7] sm:$0xff]
    %v591 = vmul.f32 %v580, %v590
    %v592 = vmul.f32 %v584, %v589
    %v593 = vadd.f32 %v591, %v592
    %v594 = vtanh.pop %v593
    %v595 = vmul.f32 %v588, %v594
    %596 = vst [vmem:[#allocation11] sm:$0xff] %v588
    %597 = vst [vmem:[#allocation12] sm:$0xff] %v595
    %598 = vst [vmem:[#allocation14] sm:$0xff] %v593
    // Predicated region
    $region46: #{lstm_cell_forward.1} parent=1 // pred_check
      _
    $region47: #{lstm_cell_forward.1} parent=1 // pred_check_branch
      %600 = sbr.rel (0) target = $region49
    $region48: #{lstm_cell_forward.1} parent=1 // pred_region
      %s602 = ssub.s32 128, 128
      %603 = vsyncadd [#allocation4], %s602
      %s605 = sshll.u32 [#allocation11], 4
      %s606 = int_to_ptr.vmem [resolvable:$true] %s605
      %608 = dma.vmem_to_hbm [thread:$0]  %s606, 128, %s6, [#allocation4]
    $region49: #{lstm_cell_forward.1} parent=1 // pred_fallthru
      _
    // Predicated region
    $region50: #{lstm_cell_forward.1} parent=1 // pred_check
      _
    $region51: #{lstm_cell_forward.1} parent=1 // pred_check_branch
      %610 = sbr.rel (0) target = $region53
    $region52: #{lstm_cell_forward.1} parent=1 // pred_region
      %s612 = ssub.s32 128, 128
      %613 = vsyncadd [#allocation13], %s612
      %s615 = sshll.u32 [#allocation12], 4
      %s616 = int_to_ptr.vmem [resolvable:$true] %s615
      %618 = dma.vmem_to_hbm [thread:$0]  %s616, 128, %s7, [#allocation13]
    $region53: #{lstm_cell_forward.1} parent=1 // pred_fallthru
      _
    // Predicated region
    $region54: #{lstm_cell_forward.1} parent=1 // pred_check
      _
    $region55: #{lstm_cell_forward.1} parent=1 // pred_check_branch
      %620 = sbr.rel (0) target = $region57
    $region56: #{lstm_cell_forward.1} parent=1 // pred_region
      %s622 = ssub.s32 128, 128
      %623 = vsyncadd [#allocation13], %s622
      %s625 = sshll.u32 [#allocation14], 4
      %s626 = int_to_ptr.vmem [resolvable:$true] %s625
      %628 = dma.vmem_to_hbm [thread:$0]  %s626, 128, %s8, [#allocation13]
    $region57: #{lstm_cell_forward.1} parent=1 // pred_fallthru
      _
    // Predicated region
    $region58: #{lstm_cell_forward.1} parent=1 // pred_check
      _
    $region59: #{lstm_cell_forward.1} parent=1 // pred_check_branch
      %630 = sbr.rel (0) target = $region61
    $region60: #{lstm_cell_forward.1} parent=1 // pred_region
      %631 = dma.done [#allocation4], 128
    $region61: #{lstm_cell_forward.1} parent=1 // pred_fallthru
      _
    // Predicated region
    $region62: #{lstm_cell_forward.1} parent=1 // pred_check
      _
    $region63: #{lstm_cell_forward.1} parent=1 // pred_check_branch
      %633 = sbr.rel (0) target = $region65
    $region64: #{lstm_cell_forward.1} parent=1 // pred_region
      %634 = dma.done [#allocation13], 128
    $region65: #{lstm_cell_forward.1} parent=1 // pred_fallthru
      _
    // Predicated region
    $region66: #{lstm_cell_forward.1} parent=1 // pred_check
      _
    $region67: #{lstm_cell_forward.1} parent=1 // pred_check_branch
      %636 = sbr.rel (0) target = $region69
    $region68: #{lstm_cell_forward.1} parent=1 // pred_region
      %637 = dma.done [#allocation13], 128
    $region69: #{lstm_cell_forward.1} parent=1 // pred_fallthru
      _
    %638 = vsyncpa [#allocation3], 1
    %639 = vsyncpa [#allocation6], 1
    %640 = vsyncpa [#allocation9], 1
    %641 = vsyncpa [#allocation4], 1
    %642 = vsyncpa [#allocation13], 1

</llo_original>
